<compile_context>
chip_gen: v7x
topology: tpu7x:2x2x1
jax: 0.10.0
libtpu: 0.0.40
codegen_flags: <defaults>
</compile_context>

<pallas_src>
import functools
import math

import jax
import jax.numpy as jnp
import numpy as np
from jax.experimental import pallas as pl
from jax.experimental.pallas import tpu as pltpu


# ---------------------------------------------------------------------------
# Fused SPP kernel (channel-first, flat spatial)
# ---------------------------------------------------------------------------
def _spp_kernel(rc_ref, x_ref, w1_ref, s1_ref, b1_ref, w2_ref, s2_ref, b2_ref,
                o_ref, slab_ref, *, h, w):
    hw = h * w
    c_ = w1_ref.shape[0]
    neg = jnp.float32(-jnp.inf)

    def silu(v):
        # EUP exp + EUP approximate reciprocal (keeps the VPU slots free)
        return v * pl.reciprocal(1.0 + jnp.exp(-v), approx=True)

    # ---- cv1: 1x1 conv (bf16 MXU operands, f32 accumulate) + BN + SiLU ------
    x = x_ref[0].astype(jnp.bfloat16)                                  # (c1, hw)
    y = jnp.dot(w1_ref[...], x, preferred_element_type=jnp.float32)    # (c_, hw)
    y = silu(y * s1_ref[...] + b1_ref[...])

    # ---- stride-1 max pools (5, 9, 13) on the flat (c_, hw) layout ----------
    # Shifts are XLU lane rolls; wrapped / out-of-image lanes are masked to
    # -inf, which reproduces PyTorch MaxPool2d(padding=k//2) semantics.
    row = rc_ref[0:1, :]                                               # (1, hw)
    col = rc_ref[1:2, :]                                               # (1, hw)

    # hoist the masks once (jax does not CSE broadcasts inside loops)
    w_taps, h_taps = [], []
    for d in (1, 2):
        w_taps.append((col >= d, d))               # take v[.., i, j-d]
        w_taps.append((col < (w - d), hw - d))     # take v[.., i, j+d]
        h_taps.append((row >= d, w * d))           # take v[.., i-d, j]
        h_taps.append((row < (h - d), hw - w * d))  # take v[.., i+d, j]

    def tap_max(v, taps):
        m = v
        for ok, shift in taps:
            m = jnp.maximum(m, jnp.where(ok, pltpu.roll(v, shift, axis=1), neg))
        return m

    def pool5(v):
        # separable 5x5 max pool, stride 1, implicit -inf padding
        return tap_max(tap_max(v, w_taps), h_taps)

    # write the (virtual) concat [y, p5, p9, p13] into the bf16 VMEM slab
    slab_ref[pl.ds(0, c_), :] = y.astype(slab_ref.dtype)
    p = y
    for t in range(1, 4):
        p = pool5(p)                               # 5x5, then 9x9, then 13x13
        slab_ref[pl.ds(t * c_, c_), :] = p.astype(slab_ref.dtype)

    # ---- cv2: single matmul over the concat slab (K = 4*c_) + BN + SiLU -----
    out = jnp.dot(w2_ref[...], slab_ref[...], preferred_element_type=jnp.float32)
    out = silu(out * s2_ref[...] + b2_ref[...])
    o_ref[0] = out.astype(o_ref.dtype)


# ---------------------------------------------------------------------------
# Wrapper (NCHW in / NCHW out, no transposes — only free contiguous reshapes)
# ---------------------------------------------------------------------------
def bn_fold(gamma, beta, mean, var, eps=1e-5):
    s = gamma / jnp.sqrt(var + eps)
    return s.reshape(-1, 1), (beta - mean * s).reshape(-1, 1)


def spp_forward(p, x_nchw):
    n, c1, h, w = x_nchw.shape
    c_ = p["w1"].shape[0]
    c2 = p["w2"].shape[0]
    assert p["w2"].shape[1] == 4 * c_
    hw = h * w

    x = x_nchw.reshape(n, c1, hw)                      # free contiguous reshape

    w1 = p["w1"][:, :, 0, 0].astype(jnp.bfloat16)      # (c_, c1)
    w2 = p["w2"][:, :, 0, 0].astype(jnp.bfloat16)      # (c2, 4*c_)
    s1, b1 = bn_fold(*p["bn1"])                        # (c_, 1)
    s2, b2 = bn_fold(*p["bn2"])                        # (c2, 1)

    idx = jnp.arange(hw, dtype=jnp.int32)
    rc = jnp.stack([idx // w, idx % w])                # (2, hw) row / col indices

    # explicit per-step VMEM budget: double-buffered in/out, bf16 concat slab,
    # pooling temporaries, weights — with headroom.
    step_bytes = (2 * (c1 + c2) * hw * 4 + 4 * c_ * hw * 2 + 12 * c_ * hw * 4
                  + (c_ * c1 + c2 * 4 * c_) * 2 + 2 * hw * 4)
    vmem_limit = int(min(max(4 * step_bytes, 8 << 20), 100 << 20))

    kernel = functools.partial(_spp_kernel, h=h, w=w)
    out = pl.pallas_call(
        kernel,
        out_shape=jax.ShapeDtypeStruct((n, c2, hw), x.dtype),
        grid=(n,),
        in_specs=[
            pl.BlockSpec((2, hw), lambda i: (0, 0)),           # row/col indices
            pl.BlockSpec((1, c1, hw), lambda i: (i, 0, 0)),    # x (per image)
            pl.BlockSpec((c_, c1), lambda i: (0, 0)),          # w1
            pl.BlockSpec((c_, 1), lambda i: (0, 0)),           # bn1 scale
            pl.BlockSpec((c_, 1), lambda i: (0, 0)),           # bn1 bias
            pl.BlockSpec((c2, 4 * c_), lambda i: (0, 0)),      # w2
            pl.BlockSpec((c2, 1), lambda i: (0, 0)),           # bn2 scale
            pl.BlockSpec((c2, 1), lambda i: (0, 0)),           # bn2 bias
        ],
        out_specs=pl.BlockSpec((1, c2, hw), lambda i: (i, 0, 0)),
        scratch_shapes=[pltpu.VMEM((4 * c_, hw), jnp.bfloat16)],   # concat slab
        compiler_params=pltpu.CompilerParams(
            dimension_semantics=("parallel",),
            vmem_limit_bytes=vmem_limit),
    )(rc, x, w1, s1, b1, w2, s2, b2)

    return out.reshape(n, c2, h, w)                    # free contiguous reshape


# ---------------------------------------------------------------------------
# Parameters (deterministic, synthetic)
# ---------------------------------------------------------------------------
def init_params(key, c1, c2):
    c_ = c1 // 2
    ks = jax.random.split(key, 4)

    def conv_w(k, co, ci):
        return jax.random.normal(k, (co, ci, 1, 1), jnp.float32) / math.sqrt(ci)

    def bn_p(k, c):
        k1, k2, k3, k4 = jax.random.split(k, 4)
        gamma = jax.random.uniform(k1, (c,), jnp.float32, 0.5, 1.5)
        beta = 0.1 * jax.random.normal(k2, (c,), jnp.float32)
        mean = 0.1 * jax.random.normal(k3, (c,), jnp.float32)
        var = jax.random.uniform(k4, (c,), jnp.float32, 0.5, 1.5)
        return gamma, beta, mean, var

    p = dict(
        w1=conv_w(ks[0], c_, c1), bn1=bn_p(ks[1], c_),      # cv1 (Conv)
        w2=conv_w(ks[2], c2, 4 * c_), bn2=bn_p(ks[3], c2),  # cv2 (Conv)
    )
    return p, c_


# ---------------------------------------------------------------------------
# Pure-JAX reference (mirrors the PyTorch forward, NCHW, eval-mode BN)
# ---------------------------------------------------------------------------
def _bn_apply(x, gamma, beta, mean, var, eps=1e-5):
    s = gamma / jnp.sqrt(var + eps)
    b = beta - mean * s
    return x * s[None, :, None, None] + b[None, :, None, None]


def _conv1x1_nchw(x, w):
    return jax.lax.conv_general_dilated(
        x, w, (1, 1), [(0, 0), (0, 0)],
        dimension_numbers=("NCHW", "OIHW", "NCHW"))


def _maxpool_nchw(x, k):
    pad = k // 2
    return jax.lax.reduce_window(
        x, -jnp.inf, jax.lax.max,
        (1, 1, k, k), (1, 1, 1, 1),
        ((0, 0), (0, 0), (pad, pad), (pad, pad)))


def ref_forward(p, x):
    silu = lambda v: v * jax.nn.sigmoid(v)
    y = silu(_bn_apply(_conv1x1_nchw(x, p["w1"]), *p["bn1"]))
    cat = jnp.concatenate([y] + [_maxpool_nchw(y, k) for k in (5, 9, 13)], axis=1)
    return silu(_bn_apply(_conv1x1_nchw(cat, p["w2"]), *p["bn2"]))


# ---------------------------------------------------------------------------
if __name__ == "__main__":
    key = jax.random.PRNGKey(0)
    kp, kx = jax.random.split(key)

    c1, c2, n_batch, hh, ww = 4, 4, 2, 16, 16
    params, _ = init_params(kp, c1, c2)
    x = jax.random.normal(kx, (n_batch, c1, hh, ww), jnp.float32)

    out = jax.block_until_ready(spp_forward(params, x))
    ref = ref_forward(params, x)

    # Tolerance sized for bf16 MXU operands / bf16 concat slab / approximate
    # EUP reciprocal vs. the f32 XLA conv reference at O(1) activations.
    np.testing.assert_allclose(np.asarray(out), np.asarray(ref),
                               atol=3e-2, rtol=3e-2)
    print("KERNEL_OK")
</pallas_src>

<mosaic_0001>
module attributes {stable_mosaic.version = 11 : i64} {
  func.func @_spp_kernel(%arg0: i32, %arg1: memref<2x256xi32, #tpu.memory_space<vmem>>, %arg2: memref<1x4x256xf32, #tpu.memory_space<vmem>>, %arg3: memref<2x4xbf16, #tpu.memory_space<vmem>>, %arg4: memref<2x1xf32, #tpu.memory_space<vmem>>, %arg5: memref<2x1xf32, #tpu.memory_space<vmem>>, %arg6: memref<4x8xbf16, #tpu.memory_space<vmem>>, %arg7: memref<4x1xf32, #tpu.memory_space<vmem>>, %arg8: memref<4x1xf32, #tpu.memory_space<vmem>>, %arg9: memref<1x4x256xf32, #tpu.memory_space<vmem>>, %arg10: memref<8x256xbf16, #tpu.memory_space<vmem>>) attributes {dimension_semantics = [#tpu.dimension_semantics<parallel>], iteration_bounds = array<i64: 2>, scalar_prefetch = 0 : i64, scratch_operands = 1 : i64, tpu.core_type = #tpu.core_type<tc>, window_params = [{pipeline_mode = #tpu.pipeline_mode<synchronous>, transform_indices = @transform_0, window_bounds = array<i64: 2, 256>}, {transform_indices = @transform_1, window_bounds = array<i64: 1, 4, 256>}, {pipeline_mode = #tpu.pipeline_mode<synchronous>, transform_indices = @transform_2, window_bounds = array<i64: 2, 4>}, {pipeline_mode = #tpu.pipeline_mode<synchronous>, transform_indices = @transform_3, window_bounds = array<i64: 2, 1>}, {pipeline_mode = #tpu.pipeline_mode<synchronous>, transform_indices = @transform_4, window_bounds = array<i64: 2, 1>}, {pipeline_mode = #tpu.pipeline_mode<synchronous>, transform_indices = @transform_5, window_bounds = array<i64: 4, 8>}, {pipeline_mode = #tpu.pipeline_mode<synchronous>, transform_indices = @transform_6, window_bounds = array<i64: 4, 1>}, {pipeline_mode = #tpu.pipeline_mode<synchronous>, transform_indices = @transform_7, window_bounds = array<i64: 4, 1>}, {transform_indices = @transform_8, window_bounds = array<i64: 1, 4, 256>}]} {
    %c0 = arith.constant 0 : index
    %c0_0 = arith.constant 0 : index
    %c0_1 = arith.constant 0 : index
    %0 = vector.load %arg2[%c0, %c0_0, %c0_1] : memref<1x4x256xf32, #tpu.memory_space<vmem>>, vector<1x4x256xf32>
    %1 = vector.shape_cast %0 : vector<1x4x256xf32> to vector<4x256xf32>
    %2 = arith.truncf %1 : vector<4x256xf32> to vector<4x256xbf16>
    %c0_2 = arith.constant 0 : index
    %c0_3 = arith.constant 0 : index
    %3 = vector.load %arg3[%c0_2, %c0_3] : memref<2x4xbf16, #tpu.memory_space<vmem>>, vector<2x4xbf16>
    %cst = arith.constant dense<0.000000e+00> : vector<2x256xf32>
    %4 = tpu.matmul %3, %2, %cst {dimension_numbers = #tpu.dot_dimension_numbers<[1], [0], [0], [1], [0, 0, 1, 1], [], []>} : vector<2x4xbf16>, vector<4x256xbf16>, vector<2x256xf32> -> vector<2x256xf32>
    %c0_4 = arith.constant 0 : index
    %c0_5 = arith.constant 0 : index
    %5 = vector.load %arg4[%c0_4, %c0_5] : memref<2x1xf32, #tpu.memory_space<vmem>>, vector<2x1xf32>
    %6 = vector.broadcast %5 : vector<2x1xf32> to vector<2x256xf32>
    %7 = arith.mulf %4, %6 : vector<2x256xf32>
    %c0_6 = arith.constant 0 : index
    %c0_7 = arith.constant 0 : index
    %8 = vector.load %arg5[%c0_6, %c0_7] : memref<2x1xf32, #tpu.memory_space<vmem>>, vector<2x1xf32>
    %9 = vector.broadcast %8 : vector<2x1xf32> to vector<2x256xf32>
    %10 = arith.addf %7, %9 : vector<2x256xf32>
    %cst_8 = arith.constant 0.000000e+00 : f32
    %11 = vector.broadcast %cst_8 : f32 to vector<2x256xf32>
    %12 = arith.subf %11, %10 : vector<2x256xf32>
    %13 = math.exp %12 : vector<2x256xf32>
    %cst_9 = arith.constant 1.000000e+00 : f32
    %14 = vector.broadcast %cst_9 : f32 to vector<2x256xf32>
    %15 = arith.addf %14, %13 : vector<2x256xf32>
    %16 = tpu.reciprocal %15 {approx = true} : vector<2x256xf32> -> vector<2x256xf32>
    %17 = arith.mulf %10, %16 : vector<2x256xf32>
    %c0_10 = arith.constant 0 : index
    %c0_11 = arith.constant 0 : index
    %18 = vector.load %arg1[%c0_10, %c0_11] : memref<2x256xi32, #tpu.memory_space<vmem>>, vector<1x256xi32>
    %c1 = arith.constant 1 : index
    %c0_12 = arith.constant 0 : index
    %19 = vector.load %arg1[%c1, %c0_12] : memref<2x256xi32, #tpu.memory_space<vmem>>, vector<1x256xi32>
    %c1_i32 = arith.constant 1 : i32
    %20 = vector.broadcast %c1_i32 : i32 to vector<1x256xi32>
    %21 = arith.cmpi sge, %19, %20 : vector<1x256xi32>
    %c15_i32 = arith.constant 15 : i32
    %22 = vector.broadcast %c15_i32 : i32 to vector<1x256xi32>
    %23 = arith.cmpi slt, %19, %22 : vector<1x256xi32>
    %c1_i32_13 = arith.constant 1 : i32
    %24 = vector.broadcast %c1_i32_13 : i32 to vector<1x256xi32>
    %25 = arith.cmpi sge, %18, %24 : vector<1x256xi32>
    %c15_i32_14 = arith.constant 15 : i32
    %26 = vector.broadcast %c15_i32_14 : i32 to vector<1x256xi32>
    %27 = arith.cmpi slt, %18, %26 : vector<1x256xi32>
    %c2_i32 = arith.constant 2 : i32
    %28 = vector.broadcast %c2_i32 : i32 to vector<1x256xi32>
    %29 = arith.cmpi sge, %19, %28 : vector<1x256xi32>
    %c14_i32 = arith.constant 14 : i32
    %30 = vector.broadcast %c14_i32 : i32 to vector<1x256xi32>
    %31 = arith.cmpi slt, %19, %30 : vector<1x256xi32>
    %c2_i32_15 = arith.constant 2 : i32
    %32 = vector.broadcast %c2_i32_15 : i32 to vector<1x256xi32>
    %33 = arith.cmpi sge, %18, %32 : vector<1x256xi32>
    %c14_i32_16 = arith.constant 14 : i32
    %34 = vector.broadcast %c14_i32_16 : i32 to vector<1x256xi32>
    %35 = arith.cmpi slt, %18, %34 : vector<1x256xi32>
    %36 = arith.truncf %17 : vector<2x256xf32> to vector<2x256xbf16>
    %c0_17 = arith.constant 0 : index
    %c0_18 = arith.constant 0 : index
    %37 = vector.load %arg10[%c0_17, %c0_18] : memref<8x256xbf16, #tpu.memory_space<vmem>>, vector<2x256xbf16>
    tpu.vector_store %arg10[%c0_17, %c0_18], %36 {strides = array<i32>} : memref<8x256xbf16, #tpu.memory_space<vmem>>, vector<2x256xbf16>,
    %c1_i32_19 = arith.constant 1 : i32
    %38 = tpu.dynamic_rotate %17 by %c1_i32_19 dim 1 : vector<2x256xf32>, i32 -> vector<2x256xf32>
    %cst_20 = arith.constant 0xFF800000 : f32
    %39 = vector.shape_cast %21 : vector<1x256xi1> to vector<1x256xi1>
    %40 = vector.broadcast %39 : vector<1x256xi1> to vector<2x256xi1>
    %41 = vector.broadcast %cst_20 : f32 to vector<2x256xf32>
    %42 = arith.select %40, %38, %41 : vector<2x256xi1>, vector<2x256xf32>
    %43 = arith.maximumf %17, %42 : vector<2x256xf32>
    %c255_i32 = arith.constant 255 : i32
    %44 = tpu.dynamic_rotate %17 by %c255_i32 dim 1 : vector<2x256xf32>, i32 -> vector<2x256xf32>
    %cst_21 = arith.constant 0xFF800000 : f32
    %45 = vector.shape_cast %23 : vector<1x256xi1> to vector<1x256xi1>
    %46 = vector.broadcast %45 : vector<1x256xi1> to vector<2x256xi1>
    %47 = vector.broadcast %cst_21 : f32 to vector<2x256xf32>
    %48 = arith.select %46, %44, %47 : vector<2x256xi1>, vector<2x256xf32>
    %49 = arith.maximumf %43, %48 : vector<2x256xf32>
    %c2_i32_22 = arith.constant 2 : i32
    %50 = tpu.dynamic_rotate %17 by %c2_i32_22 dim 1 : vector<2x256xf32>, i32 -> vector<2x256xf32>
    %cst_23 = arith.constant 0xFF800000 : f32
    %51 = vector.shape_cast %29 : vector<1x256xi1> to vector<1x256xi1>
    %52 = vector.broadcast %51 : vector<1x256xi1> to vector<2x256xi1>
    %53 = vector.broadcast %cst_23 : f32 to vector<2x256xf32>
    %54 = arith.select %52, %50, %53 : vector<2x256xi1>, vector<2x256xf32>
    %55 = arith.maximumf %49, %54 : vector<2x256xf32>
    %c254_i32 = arith.constant 254 : i32
    %56 = tpu.dynamic_rotate %17 by %c254_i32 dim 1 : vector<2x256xf32>, i32 -> vector<2x256xf32>
    %cst_24 = arith.constant 0xFF800000 : f32
    %57 = vector.shape_cast %31 : vector<1x256xi1> to vector<1x256xi1>
    %58 = vector.broadcast %57 : vector<1x256xi1> to vector<2x256xi1>
    %59 = vector.broadcast %cst_24 : f32 to vector<2x256xf32>
    %60 = arith.select %58, %56, %59 : vector<2x256xi1>, vector<2x256xf32>
    %61 = arith.maximumf %55, %60 : vector<2x256xf32>
    %c16_i32 = arith.constant 16 : i32
    %62 = tpu.dynamic_rotate %61 by %c16_i32 dim 1 : vector<2x256xf32>, i32 -> vector<2x256xf32>
    %cst_25 = arith.constant 0xFF800000 : f32
    %63 = vector.shape_cast %25 : vector<1x256xi1> to vector<1x256xi1>
    %64 = vector.broadcast %63 : vector<1x256xi1> to vector<2x256xi1>
    %65 = vector.broadcast %cst_25 : f32 to vector<2x256xf32>
    %66 = arith.select %64, %62, %65 : vector<2x256xi1>, vector<2x256xf32>
    %67 = arith.maximumf %61, %66 : vector<2x256xf32>
    %c240_i32 = arith.constant 240 : i32
    %68 = tpu.dynamic_rotate %61 by %c240_i32 dim 1 : vector<2x256xf32>, i32 -> vector<2x256xf32>
    %cst_26 = arith.constant 0xFF800000 : f32
    %69 = vector.shape_cast %27 : vector<1x256xi1> to vector<1x256xi1>
    %70 = vector.broadcast %69 : vector<1x256xi1> to vector<2x256xi1>
    %71 = vector.broadcast %cst_26 : f32 to vector<2x256xf32>
    %72 = arith.select %70, %68, %71 : vector<2x256xi1>, vector<2x256xf32>
    %73 = arith.maximumf %67, %72 : vector<2x256xf32>
    %c32_i32 = arith.constant 32 : i32
    %74 = tpu.dynamic_rotate %61 by %c32_i32 dim 1 : vector<2x256xf32>, i32 -> vector<2x256xf32>
    %cst_27 = arith.constant 0xFF800000 : f32
    %75 = vector.shape_cast %33 : vector<1x256xi1> to vector<1x256xi1>
    %76 = vector.broadcast %75 : vector<1x256xi1> to vector<2x256xi1>
    %77 = vector.broadcast %cst_27 : f32 to vector<2x256xf32>
    %78 = arith.select %76, %74, %77 : vector<2x256xi1>, vector<2x256xf32>
    %79 = arith.maximumf %73, %78 : vector<2x256xf32>
    %c224_i32 = arith.constant 224 : i32
    %80 = tpu.dynamic_rotate %61 by %c224_i32 dim 1 : vector<2x256xf32>, i32 -> vector<2x256xf32>
    %cst_28 = arith.constant 0xFF800000 : f32
    %81 = vector.shape_cast %35 : vector<1x256xi1> to vector<1x256xi1>
    %82 = vector.broadcast %81 : vector<1x256xi1> to vector<2x256xi1>
    %83 = vector.broadcast %cst_28 : f32 to vector<2x256xf32>
    %84 = arith.select %82, %80, %83 : vector<2x256xi1>, vector<2x256xf32>
    %85 = arith.maximumf %79, %84 : vector<2x256xf32>
    %86 = arith.truncf %85 : vector<2x256xf32> to vector<2x256xbf16>
    %c2 = arith.constant 2 : index
    %c0_29 = arith.constant 0 : index
    %87 = vector.load %arg10[%c2, %c0_29] : memref<8x256xbf16, #tpu.memory_space<vmem>>, vector<2x256xbf16>
    tpu.vector_store %arg10[%c2, %c0_29], %86 {strides = array<i32>} : memref<8x256xbf16, #tpu.memory_space<vmem>>, vector<2x256xbf16>,
    %c1_i32_30 = arith.constant 1 : i32
    %88 = tpu.dynamic_rotate %85 by %c1_i32_30 dim 1 : vector<2x256xf32>, i32 -> vector<2x256xf32>
    %cst_31 = arith.constant 0xFF800000 : f32
    %89 = vector.shape_cast %21 : vector<1x256xi1> to vector<1x256xi1>
    %90 = vector.broadcast %89 : vector<1x256xi1> to vector<2x256xi1>
    %91 = vector.broadcast %cst_31 : f32 to vector<2x256xf32>
    %92 = arith.select %90, %88, %91 : vector<2x256xi1>, vector<2x256xf32>
    %93 = arith.maximumf %85, %92 : vector<2x256xf32>
    %c255_i32_32 = arith.constant 255 : i32
    %94 = tpu.dynamic_rotate %85 by %c255_i32_32 dim 1 : vector<2x256xf32>, i32 -> vector<2x256xf32>
    %cst_33 = arith.constant 0xFF800000 : f32
    %95 = vector.shape_cast %23 : vector<1x256xi1> to vector<1x256xi1>
    %96 = vector.broadcast %95 : vector<1x256xi1> to vector<2x256xi1>
    %97 = vector.broadcast %cst_33 : f32 to vector<2x256xf32>
    %98 = arith.select %96, %94, %97 : vector<2x256xi1>, vector<2x256xf32>
    %99 = arith.maximumf %93, %98 : vector<2x256xf32>
    %c2_i32_34 = arith.constant 2 : i32
    %100 = tpu.dynamic_rotate %85 by %c2_i32_34 dim 1 : vector<2x256xf32>, i32 -> vector<2x256xf32>
    %cst_35 = arith.constant 0xFF800000 : f32
    %101 = vector.shape_cast %29 : vector<1x256xi1> to vector<1x256xi1>
    %102 = vector.broadcast %101 : vector<1x256xi1> to vector<2x256xi1>
    %103 = vector.broadcast %cst_35 : f32 to vector<2x256xf32>
    %104 = arith.select %102, %100, %103 : vector<2x256xi1>, vector<2x256xf32>
    %105 = arith.maximumf %99, %104 : vector<2x256xf32>
    %c254_i32_36 = arith.constant 254 : i32
    %106 = tpu.dynamic_rotate %85 by %c254_i32_36 dim 1 : vector<2x256xf32>, i32 -> vector<2x256xf32>
    %cst_37 = arith.constant 0xFF800000 : f32
    %107 = vector.shape_cast %31 : vector<1x256xi1> to vector<1x256xi1>
    %108 = vector.broadcast %107 : vector<1x256xi1> to vector<2x256xi1>
    %109 = vector.broadcast %cst_37 : f32 to vector<2x256xf32>
    %110 = arith.select %108, %106, %109 : vector<2x256xi1>, vector<2x256xf32>
    %111 = arith.maximumf %105, %110 : vector<2x256xf32>
    %c16_i32_38 = arith.constant 16 : i32
    %112 = tpu.dynamic_rotate %111 by %c16_i32_38 dim 1 : vector<2x256xf32>, i32 -> vector<2x256xf32>
    %cst_39 = arith.constant 0xFF800000 : f32
    %113 = vector.shape_cast %25 : vector<1x256xi1> to vector<1x256xi1>
    %114 = vector.broadcast %113 : vector<1x256xi1> to vector<2x256xi1>
    %115 = vector.broadcast %cst_39 : f32 to vector<2x256xf32>
    %116 = arith.select %114, %112, %115 : vector<2x256xi1>, vector<2x256xf32>
    %117 = arith.maximumf %111, %116 : vector<2x256xf32>
    %c240_i32_40 = arith.constant 240 : i32
    %118 = tpu.dynamic_rotate %111 by %c240_i32_40 dim 1 : vector<2x256xf32>, i32 -> vector<2x256xf32>
    %cst_41 = arith.constant 0xFF800000 : f32
    %119 = vector.shape_cast %27 : vector<1x256xi1> to vector<1x256xi1>
    %120 = vector.broadcast %119 : vector<1x256xi1> to vector<2x256xi1>
    %121 = vector.broadcast %cst_41 : f32 to vector<2x256xf32>
    %122 = arith.select %120, %118, %121 : vector<2x256xi1>, vector<2x256xf32>
    %123 = arith.maximumf %117, %122 : vector<2x256xf32>
    %c32_i32_42 = arith.constant 32 : i32
    %124 = tpu.dynamic_rotate %111 by %c32_i32_42 dim 1 : vector<2x256xf32>, i32 -> vector<2x256xf32>
    %cst_43 = arith.constant 0xFF800000 : f32
    %125 = vector.shape_cast %33 : vector<1x256xi1> to vector<1x256xi1>
    %126 = vector.broadcast %125 : vector<1x256xi1> to vector<2x256xi1>
    %127 = vector.broadcast %cst_43 : f32 to vector<2x256xf32>
    %128 = arith.select %126, %124, %127 : vector<2x256xi1>, vector<2x256xf32>
    %129 = arith.maximumf %123, %128 : vector<2x256xf32>
    %c224_i32_44 = arith.constant 224 : i32
    %130 = tpu.dynamic_rotate %111 by %c224_i32_44 dim 1 : vector<2x256xf32>, i32 -> vector<2x256xf32>
    %cst_45 = arith.constant 0xFF800000 : f32
    %131 = vector.shape_cast %35 : vector<1x256xi1> to vector<1x256xi1>
    %132 = vector.broadcast %131 : vector<1x256xi1> to vector<2x256xi1>
    %133 = vector.broadcast %cst_45 : f32 to vector<2x256xf32>
    %134 = arith.select %132, %130, %133 : vector<2x256xi1>, vector<2x256xf32>
    %135 = arith.maximumf %129, %134 : vector<2x256xf32>
    %136 = arith.truncf %135 : vector<2x256xf32> to vector<2x256xbf16>
    %c4 = arith.constant 4 : index
    %c0_46 = arith.constant 0 : index
    %137 = vector.load %arg10[%c4, %c0_46] : memref<8x256xbf16, #tpu.memory_space<vmem>>, vector<2x256xbf16>
    tpu.vector_store %arg10[%c4, %c0_46], %136 {strides = array<i32>} : memref<8x256xbf16, #tpu.memory_space<vmem>>, vector<2x256xbf16>,
    %c1_i32_47 = arith.constant 1 : i32
    %138 = tpu.dynamic_rotate %135 by %c1_i32_47 dim 1 : vector<2x256xf32>, i32 -> vector<2x256xf32>
    %cst_48 = arith.constant 0xFF800000 : f32
    %139 = vector.shape_cast %21 : vector<1x256xi1> to vector<1x256xi1>
    %140 = vector.broadcast %139 : vector<1x256xi1> to vector<2x256xi1>
    %141 = vector.broadcast %cst_48 : f32 to vector<2x256xf32>
    %142 = arith.select %140, %138, %141 : vector<2x256xi1>, vector<2x256xf32>
    %143 = arith.maximumf %135, %142 : vector<2x256xf32>
    %c255_i32_49 = arith.constant 255 : i32
    %144 = tpu.dynamic_rotate %135 by %c255_i32_49 dim 1 : vector<2x256xf32>, i32 -> vector<2x256xf32>
    %cst_50 = arith.constant 0xFF800000 : f32
    %145 = vector.shape_cast %23 : vector<1x256xi1> to vector<1x256xi1>
    %146 = vector.broadcast %145 : vector<1x256xi1> to vector<2x256xi1>
    %147 = vector.broadcast %cst_50 : f32 to vector<2x256xf32>
    %148 = arith.select %146, %144, %147 : vector<2x256xi1>, vector<2x256xf32>
    %149 = arith.maximumf %143, %148 : vector<2x256xf32>
    %c2_i32_51 = arith.constant 2 : i32
    %150 = tpu.dynamic_rotate %135 by %c2_i32_51 dim 1 : vector<2x256xf32>, i32 -> vector<2x256xf32>
    %cst_52 = arith.constant 0xFF800000 : f32
    %151 = vector.shape_cast %29 : vector<1x256xi1> to vector<1x256xi1>
    %152 = vector.broadcast %151 : vector<1x256xi1> to vector<2x256xi1>
    %153 = vector.broadcast %cst_52 : f32 to vector<2x256xf32>
    %154 = arith.select %152, %150, %153 : vector<2x256xi1>, vector<2x256xf32>
    %155 = arith.maximumf %149, %154 : vector<2x256xf32>
    %c254_i32_53 = arith.constant 254 : i32
    %156 = tpu.dynamic_rotate %135 by %c254_i32_53 dim 1 : vector<2x256xf32>, i32 -> vector<2x256xf32>
    %cst_54 = arith.constant 0xFF800000 : f32
    %157 = vector.shape_cast %31 : vector<1x256xi1> to vector<1x256xi1>
    %158 = vector.broadcast %157 : vector<1x256xi1> to vector<2x256xi1>
    %159 = vector.broadcast %cst_54 : f32 to vector<2x256xf32>
    %160 = arith.select %158, %156, %159 : vector<2x256xi1>, vector<2x256xf32>
    %161 = arith.maximumf %155, %160 : vector<2x256xf32>
    %c16_i32_55 = arith.constant 16 : i32
    %162 = tpu.dynamic_rotate %161 by %c16_i32_55 dim 1 : vector<2x256xf32>, i32 -> vector<2x256xf32>
    %cst_56 = arith.constant 0xFF800000 : f32
    %163 = vector.shape_cast %25 : vector<1x256xi1> to vector<1x256xi1>
    %164 = vector.broadcast %163 : vector<1x256xi1> to vector<2x256xi1>
    %165 = vector.broadcast %cst_56 : f32 to vector<2x256xf32>
    %166 = arith.select %164, %162, %165 : vector<2x256xi1>, vector<2x256xf32>
    %167 = arith.maximumf %161, %166 : vector<2x256xf32>
    %c240_i32_57 = arith.constant 240 : i32
    %168 = tpu.dynamic_rotate %161 by %c240_i32_57 dim 1 : vector<2x256xf32>, i32 -> vector<2x256xf32>
    %cst_58 = arith.constant 0xFF800000 : f32
    %169 = vector.shape_cast %27 : vector<1x256xi1> to vector<1x256xi1>
    %170 = vector.broadcast %169 : vector<1x256xi1> to vector<2x256xi1>
    %171 = vector.broadcast %cst_58 : f32 to vector<2x256xf32>
    %172 = arith.select %170, %168, %171 : vector<2x256xi1>, vector<2x256xf32>
    %173 = arith.maximumf %167, %172 : vector<2x256xf32>
    %c32_i32_59 = arith.constant 32 : i32
    %174 = tpu.dynamic_rotate %161 by %c32_i32_59 dim 1 : vector<2x256xf32>, i32 -> vector<2x256xf32>
    %cst_60 = arith.constant 0xFF800000 : f32
    %175 = vector.shape_cast %33 : vector<1x256xi1> to vector<1x256xi1>
    %176 = vector.broadcast %175 : vector<1x256xi1> to vector<2x256xi1>
    %177 = vector.broadcast %cst_60 : f32 to vector<2x256xf32>
    %178 = arith.select %176, %174, %177 : vector<2x256xi1>, vector<2x256xf32>
    %179 = arith.maximumf %173, %178 : vector<2x256xf32>
    %c224_i32_61 = arith.constant 224 : i32
    %180 = tpu.dynamic_rotate %161 by %c224_i32_61 dim 1 : vector<2x256xf32>, i32 -> vector<2x256xf32>
    %cst_62 = arith.constant 0xFF800000 : f32
    %181 = vector.shape_cast %35 : vector<1x256xi1> to vector<1x256xi1>
    %182 = vector.broadcast %181 : vector<1x256xi1> to vector<2x256xi1>
    %183 = vector.broadcast %cst_62 : f32 to vector<2x256xf32>
    %184 = arith.select %182, %180, %183 : vector<2x256xi1>, vector<2x256xf32>
    %185 = arith.maximumf %179, %184 : vector<2x256xf32>
    %186 = arith.truncf %185 : vector<2x256xf32> to vector<2x256xbf16>
    %c6 = arith.constant 6 : index
    %c0_63 = arith.constant 0 : index
    %187 = vector.load %arg10[%c6, %c0_63] : memref<8x256xbf16, #tpu.memory_space<vmem>>, vector<2x256xbf16>
    tpu.vector_store %arg10[%c6, %c0_63], %186 {strides = array<i32>} : memref<8x256xbf16, #tpu.memory_space<vmem>>, vector<2x256xbf16>,
    %c0_64 = arith.constant 0 : index
    %c0_65 = arith.constant 0 : index
    %188 = vector.load %arg6[%c0_64, %c0_65] : memref<4x8xbf16, #tpu.memory_space<vmem>>, vector<4x8xbf16>
    %c0_66 = arith.constant 0 : index
    %c0_67 = arith.constant 0 : index
    %189 = vector.load %arg10[%c0_66, %c0_67] : memref<8x256xbf16, #tpu.memory_space<vmem>>, vector<8x256xbf16>
    %cst_68 = arith.constant dense<0.000000e+00> : vector<4x256xf32>
    %190 = tpu.matmul %188, %189, %cst_68 {dimension_numbers = #tpu.dot_dimension_numbers<[1], [0], [0], [1], [0, 0, 1, 1], [], []>} : vector<4x8xbf16>, vector<8x256xbf16>, vector<4x256xf32> -> vector<4x256xf32>
    %c0_69 = arith.constant 0 : index
    %c0_70 = arith.constant 0 : index
    %191 = vector.load %arg7[%c0_69, %c0_70] : memref<4x1xf32, #tpu.memory_space<vmem>>, vector<4x1xf32>
    %192 = vector.broadcast %191 : vector<4x1xf32> to vector<4x256xf32>
    %193 = arith.mulf %190, %192 : vector<4x256xf32>
    %c0_71 = arith.constant 0 : index
    %c0_72 = arith.constant 0 : index
    %194 = vector.load %arg8[%c0_71, %c0_72] : memref<4x1xf32, #tpu.memory_space<vmem>>, vector<4x1xf32>
    %195 = vector.broadcast %194 : vector<4x1xf32> to vector<4x256xf32>
    %196 = arith.addf %193, %195 : vector<4x256xf32>
    %cst_73 = arith.constant 0.000000e+00 : f32
    %197 = vector.broadcast %cst_73 : f32 to vector<4x256xf32>
    %198 = arith.subf %197, %196 : vector<4x256xf32>
    %199 = math.exp %198 : vector<4x256xf32>
    %cst_74 = arith.constant 1.000000e+00 : f32
    %200 = vector.broadcast %cst_74 : f32 to vector<4x256xf32>
    %201 = arith.addf %200, %199 : vector<4x256xf32>
    %202 = tpu.reciprocal %201 {approx = true} : vector<4x256xf32> -> vector<4x256xf32>
    %203 = arith.mulf %196, %202 : vector<4x256xf32>
    %c0_75 = arith.constant 0 : index
    %c0_76 = arith.constant 0 : index
    %c0_77 = arith.constant 0 : index
    %204 = vector.load %arg9[%c0_75, %c0_76, %c0_77] : memref<1x4x256xf32, #tpu.memory_space<vmem>>, vector<1x4x256xf32>
    %205 = vector.shape_cast %204 : vector<1x4x256xf32> to vector<4x256xf32>
    %206 = vector.shape_cast %203 : vector<4x256xf32> to vector<1x4x256xf32>
    tpu.vector_store %arg9[%c0_75, %c0_76, %c0_77], %206 {strides = array<i32>} : memref<1x4x256xf32, #tpu.memory_space<vmem>>, vector<1x4x256xf32>,
    return
  }
  func.func @transform_0(%arg0: i32) -> (i32, i32) {
    %c0_i32 = arith.constant 0 : i32
    %c0_i32_0 = arith.constant 0 : i32
    %c0_i32_1 = arith.constant 0 : i32
    return %c0_i32, %c0_i32_0 : i32, i32
  }
  func.func @transform_1(%arg0: i32) -> (i32, i32, i32) {
    %c0_i32 = arith.constant 0 : i32
    %c0_i32_0 = arith.constant 0 : i32
    %c0_i32_1 = arith.constant 0 : i32
    return %arg0, %c0_i32, %c0_i32_0 : i32, i32, i32
  }
  func.func @transform_2(%arg0: i32) -> (i32, i32) {
    %c0_i32 = arith.constant 0 : i32
    %c0_i32_0 = arith.constant 0 : i32
    %c0_i32_1 = arith.constant 0 : i32
    return %c0_i32, %c0_i32_0 : i32, i32
  }
  func.func @transform_3(%arg0: i32) -> (i32, i32) {
    %c0_i32 = arith.constant 0 : i32
    %c0_i32_0 = arith.constant 0 : i32
    %c0_i32_1 = arith.constant 0 : i32
    return %c0_i32, %c0_i32_0 : i32, i32
  }
  func.func @transform_4(%arg0: i32) -> (i32, i32) {
    %c0_i32 = arith.constant 0 : i32
    %c0_i32_0 = arith.constant 0 : i32
    %c0_i32_1 = arith.constant 0 : i32
    return %c0_i32, %c0_i32_0 : i32, i32
  }
  func.func @transform_5(%arg0: i32) -> (i32, i32) {
    %c0_i32 = arith.constant 0 : i32
    %c0_i32_0 = arith.constant 0 : i32
    %c0_i32_1 = arith.constant 0 : i32
    return %c0_i32, %c0_i32_0 : i32, i32
  }
  func.func @transform_6(%arg0: i32) -> (i32, i32) {
    %c0_i32 = arith.constant 0 : i32
    %c0_i32_0 = arith.constant 0 : i32
    %c0_i32_1 = arith.constant 0 : i32
    return %c0_i32, %c0_i32_0 : i32, i32
  }
  func.func @transform_7(%arg0: i32) -> (i32, i32) {
    %c0_i32 = arith.constant 0 : i32
    %c0_i32_0 = arith.constant 0 : i32
    %c0_i32_1 = arith.constant 0 : i32
    return %c0_i32, %c0_i32_0 : i32, i32
  }
  func.func @transform_8(%arg0: i32) -> (i32, i32, i32) {
    %c0_i32 = arith.constant 0 : i32
    %c0_i32_0 = arith.constant 0 : i32
    %c0_i32_1 = arith.constant 0 : i32
    return %arg0, %c0_i32, %c0_i32_0 : i32, i32, i32
  }
}

</mosaic_0001>

<llo_original>
// kernel: tpu_custom_call.1
$region0: #{tpu_custom_call.1}
  #allocation0 [shape = 'u32[]', space=smem, size = 0x4, offset = 0x4, fixed_abs, tag = 'smem constant byte address 0x4 - core index']
  #allocation1 [shape = 'u32[144,128]{1,0:T(1,128)}', space=vmem, size = 0x12000, scoped, tag = 'internal scratch']
  #allocation2 [shape = 'bf16[8,256]{1,0:T(8,128)(2,1)}', space=vmem, size = 0x1000, scoped, tag = 'scratch operand']
  %s0 = inlined_call_operand.vmem [shape: s32[2,256], index: 0, kind: input, shape index: {}]
  %s1 = inlined_call_operand.vmem [shape: f32[2,4,256], index: 1, kind: input, shape index: {}]
  %s2 = inlined_call_operand.vmem [shape: bf16[2,4], index: 2, kind: input, shape index: {}]
  %s3 = inlined_call_operand.vmem [shape: f32[2,1], index: 3, kind: input, shape index: {}]
  %s4 = inlined_call_operand.vmem [shape: f32[2,1], index: 4, kind: input, shape index: {}]
  %s5 = inlined_call_operand.vmem [shape: bf16[4,8], index: 5, kind: input, shape index: {}]
  %s6 = inlined_call_operand.vmem [shape: f32[4,1], index: 6, kind: input, shape index: {}]
  %s7 = inlined_call_operand.vmem [shape: f32[4,1], index: 7, kind: input, shape index: {}]
  %s8 = inlined_call_operand.hbm [shape: f32[2,4,256], index: 8, kind: output, shape index: {}]
  %s9 = sld [smem:[#allocation0]]
  $region65: #{tpu_custom_call.1} parent=0
    _
  %s11 = ssub.s32 1, %s9
  %s12 = scalar_select 0, %s11, %s9
  $region1: #{tpu_custom_call.1} parent=0
    #allocation3 [shape = 'u8[8192]{0}', space=vmem, size = 0x2000, scoped, tag = 'output window, operand 0']
    #allocation4 [shape = 's32[2]{0}', space=sflag, size = 0x8, scoped, tag = 'scoped memory for tpu_custom_call.1']
    %13 = vsyncpa [#allocation4], 0
    %s14 = scalar_lea.sflag [#allocation4], 1
    %15 = vsyncpa %s14, 0
    loop: start=0, step=1, limit=4
    $region2: #{tpu_custom_call.1} parent=1 // loop_pre_header
      _
    $region3: #{tpu_custom_call.1} parent=1 // loop_header
      %s17 = sphi 0, %s21
      %p18 = scmp.ge.s32.totalorder %s17, 4
      %s25 = sphi 0, %s25
      %s27 = sphi 0, %s25
      %s28 = sphi 0, %s27
      %s42 = sphi 0, %s28
      %s48 = sphi 0, %s50
      %s51 = sphi 0, %s48
      %s52 = sphi 0, %s51
      %s68 = sphi 0, %s52
      %s72 = sphi 0, %s72
      %s74 = sphi 0, %s72
      %s75 = sphi 0, %s74
      %s89 = sphi 0, %s75
      %s93 = sphi 0, %s93
      %s95 = sphi 0, %s93
      %s96 = sphi 0, %s95
      %s110 = sphi 0, %s96
      %s114 = sphi 0, %s114
      %s116 = sphi 0, %s114
      %s117 = sphi 0, %s116
      %s131 = sphi 0, %s117
      %s135 = sphi 0, %s135
      %s137 = sphi 0, %s135
      %s138 = sphi 0, %s137
      %s152 = sphi 0, %s138
      %s156 = sphi 0, %s156
      %s158 = sphi 0, %s156
      %s159 = sphi 0, %s158
      %s173 = sphi 0, %s159
      %s177 = sphi 0, %s177
      %s179 = sphi 0, %s177
      %s180 = sphi 0, %s179
      %s194 = sphi 0, %s180
      %s200 = sphi 0, %s202
      %s203 = sphi 0, %s200
      %s204 = sphi 0, %s203
      %s220 = sphi 0, %s204
    $region4: #{tpu_custom_call.1} parent=1 // loop_header_branch
      %20 = sbr.rel (%p18) target = $region8
    $region5: #{tpu_custom_call.1} parent=1 // loop_body
      %s22 = ssub.s32 %s17, 1
      %s23 = ssub.s32 %s17, 2
      %s24 = sadd.s32 %s17, 1
      %s26 = sadd.s32 %s25, 1
      %p29 = scmp.eq.s32.totalorder %s17, 1
      %p30 = scmp.ne.s32.totalorder %s25, %s27
      %p31 = scmp.eq.s32.totalorder %s17, 0
      %p32 = por %p30, %p31
      %p33 = scmp.ne.s32.totalorder %s25, %s27
      %p34 = scmp.eq.s32.totalorder %s22, 1
      %p35 = por %p33, %p34
      %p36 = scmp.ne.s32.totalorder %s27, %s28
      %p37 = scmp.eq.s32.totalorder %s22, 0
      %p38 = por %p36, %p37
      %p39 = scmp.ne.s32.totalorder %s27, %s28
      %p40 = scmp.eq.s32.totalorder %s23, 1
      %p41 = por %p39, %p40
      %p43 = scmp.ne.s32.totalorder %s28, %s42
      %p44 = scmp.eq.s32.totalorder %s23, 0
      %p45 = por %p43, %p44
      %s46 = ssub.s32 %s17, %s24
      %p47 = scmp.eq.s32.totalorder %s46, 0
      %s49 = sadd.s32 %s48, 1
      %s50 = scalar_select %p47, %s48, %s49
      %p53 = pneg %p47
      %p54 = scmp.eq.s32.totalorder %s17, 1
      %p55 = por %p53, %p54
      %p56 = scmp.ne.s32.totalorder %s48, %s51
      %p57 = scmp.eq.s32.totalorder %s17, 0
      %p58 = por %p56, %p57
      %p59 = scmp.ne.s32.totalorder %s48, %s51
      %p60 = scmp.eq.s32.totalorder %s22, 1
      %p61 = por %p59, %p60
      %p62 = scmp.ne.s32.totalorder %s51, %s52
      %p63 = scmp.eq.s32.totalorder %s22, 0
      %p64 = por %p62, %p63
      %p65 = scmp.ne.s32.totalorder %s51, %s52
      %p66 = scmp.eq.s32.totalorder %s23, 1
      %p67 = por %p65, %p66
      %p69 = scmp.ne.s32.totalorder %s52, %s68
      %p70 = scmp.eq.s32.totalorder %s23, 0
      %p71 = por %p69, %p70
      %s73 = sadd.s32 %s72, 1
      %p76 = scmp.eq.s32.totalorder %s17, 1
      %p77 = scmp.ne.s32.totalorder %s72, %s74
      %p78 = scmp.eq.s32.totalorder %s17, 0
      %p79 = por %p77, %p78
      %p80 = scmp.ne.s32.totalorder %s72, %s74
      %p81 = scmp.eq.s32.totalorder %s22, 1
      %p82 = por %p80, %p81
      %p83 = scmp.ne.s32.totalorder %s74, %s75
      %p84 = scmp.eq.s32.totalorder %s22, 0
      %p85 = por %p83, %p84
      %p86 = scmp.ne.s32.totalorder %s74, %s75
      %p87 = scmp.eq.s32.totalorder %s23, 1
      %p88 = por %p86, %p87
      %p90 = scmp.ne.s32.totalorder %s75, %s89
      %p91 = scmp.eq.s32.totalorder %s23, 0
      %p92 = por %p90, %p91
      %s94 = sadd.s32 %s93, 1
      %p97 = scmp.eq.s32.totalorder %s17, 1
      %p98 = scmp.ne.s32.totalorder %s93, %s95
      %p99 = scmp.eq.s32.totalorder %s17, 0
      %p100 = por %p98, %p99
      %p101 = scmp.ne.s32.totalorder %s93, %s95
      %p102 = scmp.eq.s32.totalorder %s22, 1
      %p103 = por %p101, %p102
      %p104 = scmp.ne.s32.totalorder %s95, %s96
      %p105 = scmp.eq.s32.totalorder %s22, 0
      %p106 = por %p104, %p105
      %p107 = scmp.ne.s32.totalorder %s95, %s96
      %p108 = scmp.eq.s32.totalorder %s23, 1
      %p109 = por %p107, %p108
      %p111 = scmp.ne.s32.totalorder %s96, %s110
      %p112 = scmp.eq.s32.totalorder %s23, 0
      %p113 = por %p111, %p112
      %s115 = sadd.s32 %s114, 1
      %p118 = scmp.eq.s32.totalorder %s17, 1
      %p119 = scmp.ne.s32.totalorder %s114, %s116
      %p120 = scmp.eq.s32.totalorder %s17, 0
      %p121 = por %p119, %p120
      %p122 = scmp.ne.s32.totalorder %s114, %s116
      %p123 = scmp.eq.s32.totalorder %s22, 1
      %p124 = por %p122, %p123
      %p125 = scmp.ne.s32.totalorder %s116, %s117
      %p126 = scmp.eq.s32.totalorder %s22, 0
      %p127 = por %p125, %p126
      %p128 = scmp.ne.s32.totalorder %s116, %s117
      %p129 = scmp.eq.s32.totalorder %s23, 1
      %p130 = por %p128, %p129
      %p132 = scmp.ne.s32.totalorder %s117, %s131
      %p133 = scmp.eq.s32.totalorder %s23, 0
      %p134 = por %p132, %p133
      %s136 = sadd.s32 %s135, 1
      %p139 = scmp.eq.s32.totalorder %s17, 1
      %p140 = scmp.ne.s32.totalorder %s135, %s137
      %p141 = scmp.eq.s32.totalorder %s17, 0
      %p142 = por %p140, %p141
      %p143 = scmp.ne.s32.totalorder %s135, %s137
      %p144 = scmp.eq.s32.totalorder %s22, 1
      %p145 = por %p143, %p144
      %p146 = scmp.ne.s32.totalorder %s137, %s138
      %p147 = scmp.eq.s32.totalorder %s22, 0
      %p148 = por %p146, %p147
      %p149 = scmp.ne.s32.totalorder %s137, %s138
      %p150 = scmp.eq.s32.totalorder %s23, 1
      %p151 = por %p149, %p150
      %p153 = scmp.ne.s32.totalorder %s138, %s152
      %p154 = scmp.eq.s32.totalorder %s23, 0
      %p155 = por %p153, %p154
      %s157 = sadd.s32 %s156, 1
      %p160 = scmp.eq.s32.totalorder %s17, 1
      %p161 = scmp.ne.s32.totalorder %s156, %s158
      %p162 = scmp.eq.s32.totalorder %s17, 0
      %p163 = por %p161, %p162
      %p164 = scmp.ne.s32.totalorder %s156, %s158
      %p165 = scmp.eq.s32.totalorder %s22, 1
      %p166 = por %p164, %p165
      %p167 = scmp.ne.s32.totalorder %s158, %s159
      %p168 = scmp.eq.s32.totalorder %s22, 0
      %p169 = por %p167, %p168
      %p170 = scmp.ne.s32.totalorder %s158, %s159
      %p171 = scmp.eq.s32.totalorder %s23, 1
      %p172 = por %p170, %p171
      %p174 = scmp.ne.s32.totalorder %s159, %s173
      %p175 = scmp.eq.s32.totalorder %s23, 0
      %p176 = por %p174, %p175
      %s178 = sadd.s32 %s177, 1
      %p181 = scmp.eq.s32.totalorder %s17, 1
      %p182 = scmp.ne.s32.totalorder %s177, %s179
      %p183 = scmp.eq.s32.totalorder %s17, 0
      %p184 = por %p182, %p183
      %p185 = scmp.ne.s32.totalorder %s177, %s179
      %p186 = scmp.eq.s32.totalorder %s22, 1
      %p187 = por %p185, %p186
      %p188 = scmp.ne.s32.totalorder %s179, %s180
      %p189 = scmp.eq.s32.totalorder %s22, 0
      %p190 = por %p188, %p189
      %p191 = scmp.ne.s32.totalorder %s179, %s180
      %p192 = scmp.eq.s32.totalorder %s23, 1
      %p193 = por %p191, %p192
      %p195 = scmp.ne.s32.totalorder %s180, %s194
      %p196 = scmp.eq.s32.totalorder %s23, 0
      %p197 = por %p195, %p196
      %s198 = ssub.s32 %s17, %s24
      %p199 = scmp.eq.s32.totalorder %s198, 0
      %s201 = sadd.s32 %s200, 1
      %s202 = scalar_select %p199, %s200, %s201
      %p205 = pneg %p199
      %p206 = scmp.eq.s32.totalorder %s17, 1
      %p207 = por %p205, %p206
      %p208 = scmp.ne.s32.totalorder %s200, %s203
      %p209 = scmp.eq.s32.totalorder %s17, 0
      %p210 = por %p208, %p209
      %p211 = scmp.ne.s32.totalorder %s200, %s203
      %p212 = scmp.eq.s32.totalorder %s22, 1
      %p213 = por %p211, %p212
      %p214 = scmp.ne.s32.totalorder %s203, %s204
      %p215 = scmp.eq.s32.totalorder %s22, 0
      %p216 = por %p214, %p215
      %p217 = scmp.ne.s32.totalorder %s203, %s204
      %p218 = scmp.eq.s32.totalorder %s23, 1
      %p219 = por %p217, %p218
      %p221 = scmp.ne.s32.totalorder %s204, %s220
      %p222 = scmp.eq.s32.totalorder %s23, 0
      %p223 = por %p221, %p222
      %p224 = scmp.le.s32.totalorder 1, %s17
      %p225 = scmp.lt.s32.totalorder %s17, 3
      %p226 = pnand %p224, %p225
      %p227 = pneg %p226
      // Predicated region
      $region9: #{tpu_custom_call.1} parent=5 // pred_check
        _
      $region10: #{tpu_custom_call.1} parent=5 // pred_check_branch
        %229 = sbr.rel (%p226) target = $region12
      $region11: #{tpu_custom_call.1} parent=5 // pred_region
        %s230 = ssub.s32 %s17, 1
        // Predicated region
        $region13: #{tpu_custom_call.1} parent=11 // pred_check
          %p231 = pneg %p38
        $region14: #{tpu_custom_call.1} parent=11 // pred_check_branch
          %233 = sbr.rel (%p231) target = $region16
        $region15: #{tpu_custom_call.1} parent=11 // pred_region
          _
        $region16: #{tpu_custom_call.1} parent=11 // pred_fallthru
          _
        // Predicated region
        $region17: #{tpu_custom_call.1} parent=11 // pred_check
          %p234 = pneg %p85
        $region18: #{tpu_custom_call.1} parent=11 // pred_check_branch
          %236 = sbr.rel (%p234) target = $region20
        $region19: #{tpu_custom_call.1} parent=11 // pred_region
          _
        $region20: #{tpu_custom_call.1} parent=11 // pred_fallthru
          _
        // Predicated region
        $region21: #{tpu_custom_call.1} parent=11 // pred_check
          %p237 = pneg %p106
        $region22: #{tpu_custom_call.1} parent=11 // pred_check_branch
          %239 = sbr.rel (%p237) target = $region24
        $region23: #{tpu_custom_call.1} parent=11 // pred_region
          _
        $region24: #{tpu_custom_call.1} parent=11 // pred_fallthru
          _
        // Predicated region
        $region25: #{tpu_custom_call.1} parent=11 // pred_check
          %p240 = pneg %p127
        $region26: #{tpu_custom_call.1} parent=11 // pred_check_branch
          %242 = sbr.rel (%p240) target = $region28
        $region27: #{tpu_custom_call.1} parent=11 // pred_region
          _
        $region28: #{tpu_custom_call.1} parent=11 // pred_fallthru
          _
        // Predicated region
        $region29: #{tpu_custom_call.1} parent=11 // pred_check
          %p243 = pneg %p148
        $region30: #{tpu_custom_call.1} parent=11 // pred_check_branch
          %245 = sbr.rel (%p243) target = $region32
        $region31: #{tpu_custom_call.1} parent=11 // pred_region
          _
        $region32: #{tpu_custom_call.1} parent=11 // pred_fallthru
          _
        // Predicated region
        $region33: #{tpu_custom_call.1} parent=11 // pred_check
          %p246 = pneg %p169
        $region34: #{tpu_custom_call.1} parent=11 // pred_check_branch
          %248 = sbr.rel (%p246) target = $region36
        $region35: #{tpu_custom_call.1} parent=11 // pred_region
          _
        $region36: #{tpu_custom_call.1} parent=11 // pred_fallthru
          _
        // Predicated region
        $region37: #{tpu_custom_call.1} parent=11 // pred_check
          %p249 = pneg %p190
        $region38: #{tpu_custom_call.1} parent=11 // pred_check_branch
          %251 = sbr.rel (%p249) target = $region40
        $region39: #{tpu_custom_call.1} parent=11 // pred_region
          _
        $region40: #{tpu_custom_call.1} parent=11 // pred_fallthru
          _
      $region12: #{tpu_custom_call.1} parent=5 // pred_fallthru
        _
      %p252 = scmp.lt.s32.totalorder %s17, 2
      // Predicated region
      $region41: #{tpu_custom_call.1} parent=5 // pred_check
        %p253 = pneg %p252
      $region42: #{tpu_custom_call.1} parent=5 // pred_check_branch
        %255 = sbr.rel (%p253) target = $region44
      $region43: #{tpu_custom_call.1} parent=5 // pred_region
        // Predicated region
        $region45: #{tpu_custom_call.1} parent=43 // pred_check
          %p256 = pneg %p58
        $region46: #{tpu_custom_call.1} parent=43 // pred_check_branch
          %258 = sbr.rel (%p256) target = $region48
        $region47: #{tpu_custom_call.1} parent=43 // pred_region
          %p259 = scmp.lt.s32.totalorder %s17, 1
          %s260 = scalar_select %p259, %s17, 1
          %s261 = smul.addr %s260, 2
          %s262 = smul.addr %s261, 4
          %s263 = scalar_lea.vmem %s1, %s262
        $region48: #{tpu_custom_call.1} parent=43 // pred_fallthru
          _
      $region44: #{tpu_custom_call.1} parent=5 // pred_fallthru
        _
      %p264 = scmp.le.s32.totalorder 1, %s17
      %p265 = scmp.lt.s32.totalorder %s17, 3
      %p266 = pnand %p264, %p265
      %p267 = pneg %p266
      // Predicated region
      $region49: #{tpu_custom_call.1} parent=5 // pred_check
        _
      $region50: #{tpu_custom_call.1} parent=5 // pred_check_branch
        %269 = sbr.rel (%p266) target = $region52
      $region51: #{tpu_custom_call.1} parent=5 // pred_region
        %s270 = ssub.s32 %s17, 1
        %p271 = pneg %p38
        %p272 = pneg %p35
        %p273 = scmp.lt.s32.totalorder %s22, 1
        %s274 = scalar_select %p273, %s22, 1
        %s275 = smul.addr %s274, 2
        %s276 = smul.addr %s275, 4
        %s277 = scalar_lea.vmem %s1, %s276
        %p278 = pneg %p64
        %p279 = pneg %p61
        %p280 = pneg %p85
        %p281 = pneg %p82
        %p282 = pneg %p106
        %p283 = pneg %p103
        %p284 = pneg %p127
        %p285 = pneg %p124
        %p286 = pneg %p148
        %p287 = pneg %p145
        %p288 = pneg %p169
        %p289 = pneg %p166
        %p290 = pneg %p190
        %p291 = pneg %p187
        %p292 = pneg %p216
        %p293 = pneg %p213
        %s294 = sand.u32 %s203, 1
        %s295 = scalar_lea.sflag [#allocation4], %s294
        %s296 = sand.u32 %s203, 1
        %s297 = smul.addr %s296, 8
        %s298 = scalar_lea.vmem [#allocation3], %s297
        %p299 = scmp.lt.s32.totalorder %s22, 1
        %s300 = scalar_select %p299, %s22, 1
        %s301 = smul.addr %s300, 2
        %s302 = smul.addr %s301, 4
        %s303 = scalar_lea.vmem %s1, %s302
        %v305 = vld [vmem:[%s303] sm:$0xff]
        %v307 = vcombine.high %v305, %v305
        %v309 = vpack.c.bf16 %v305, %v305
        %v310 = vpack.c.bf16 %v307, %v307
        %v311 = vld [vmem:[%s2] sm:$0x1]
        %vm312 = vcmask 31744
        %v314 = vsel %vm312, %v311, 0
        %vm316 = vcmask 1041408
        %v318 = vsel %vm316, %v309, 0
        %v321 = vsel %vm316, %v310, 0
        %323 = vmatprep.subr.bf16.mxu0 %v321
        %324 = vmatpush1.bf16.msra.mxu0 %v318
        %325 = vmatprep.subr.bf16.mxu0 0
        %326 = vmatpush1.bf16.msra.mxu0 0
        %327 = vmatprep.subr.bf16.mxu0 0
        %328 = vmatpush1.bf16.msra.mxu0 0
        %329 = vmatprep.subr.bf16.mxu0 0
        %330 = vmatpush1.bf16.msra.mxu0 0
        %331 = vmatprep.subr.bf16.mxu0 0
        %332 = vmatpush1.bf16.msra.mxu0 0
        %333 = vmatprep.subr.bf16.mxu0 0
        %334 = vmatpush1.bf16.msra.mxu0 0
        %335 = vmatprep.subr.bf16.mxu0 0
        %336 = vmatpush1.bf16.msra.mxu0 0
        %337 = vmatprep.subr.bf16.mxu0 0
        %338 = vmatpush1.bf16.msra.mxu0 0
        %339 = vmatprep.subr.bf16.mxu0 0
        %340 = vmatpush1.bf16.msra.mxu0 0
        %341 = vmatprep.subr.bf16.mxu0 0
        %342 = vmatpush1.bf16.msra.mxu0 0
        %343 = vmatprep.subr.bf16.mxu0 0
        %344 = vmatpush1.bf16.msra.mxu0 0
        %345 = vmatprep.subr.bf16.mxu0 0
        %346 = vmatpush1.bf16.msra.mxu0 0
        %347 = vmatprep.subr.bf16.mxu0 0
        %348 = vmatpush1.bf16.msra.mxu0 0
        %349 = vmatprep.subr.bf16.mxu0 0
        %350 = vmatpush1.bf16.msra.mxu0 0
        %351 = vmatprep.subr.bf16.mxu0 0
        %352 = vmatpush1.bf16.msra.mxu0 0
        %353 = vmatprep.subr.bf16.mxu0 0
        %354 = vmatpush1.bf16.msra.mxu0 0
        %355 = vmatprep.mubr.bf16.mxu0 0
        %356 = vmatmul.mubr.bf16.gmra.mrb[0].mxu0 %v314
        %v357 = vpop.f32.mrb[0].mxu0
        %v358 = vadd.f32 0.0, %v357
        %v359 = vpop.f32.mrb[0].mxu0
        %v360 = vadd.f32 0.0, %v359
        %v361 = vpop.f32.mrb[0].mxu0
        %v362 = vpop.f32.mrb[0].mxu0
        %363 = vdwg.mxu0
        %v364 = vld [vmem:[%s3] sm:$0x3]
        %366 = vset.pattern.permute.xlu0 0
        %367 = vperm.xlu0 %366, %v364
        %v368 = vpop.permute.xlu0 %367
        %v370 = vmul.f32 %v358, %v368
        %v371 = vmul.f32 %v360, %v368
        %v372 = vld [vmem:[%s4] sm:$0x3]
        %374 = vset.pattern.permute.xlu0 0
        %375 = vperm.xlu0 %374, %v372
        %v376 = vpop.permute.xlu0 %375
        %v378 = vadd.f32 %v370, %v376
        %v379 = vadd.f32 %v371, %v376
        %v380 = vsub.f32 0.0, %v378
        %v381 = vsub.f32 0.0, %v379
        %v382 = vmul.f32 %v380, 1.442695
        %v383 = vpow.pop %v382
        %v384 = vmul.f32 %v381, 1.442695
        %v385 = vpow.pop %v384
        %v386 = vadd.f32 %v383, 1.0
        %v387 = vadd.f32 %v385, 1.0
        %v388 = vrcp.pop %v386
        %v389 = vrcp.pop %v387
        %v390 = vmul.f32 %v378, %v388
        %v391 = vmul.f32 %v379, %v389
        %v392 = vld [vmem:[%s0] ss:$2 sm:$0x3]
        %s393 = scalar_lea.vmem %s0, 1
        %v394 = vld [vmem:[%s393] ss:$2 sm:$0x3]
        %vm395 = vcmp.ge.s32.totalorder %v394, 1
        %vm396 = vcmp.lt.s32.totalorder %v394, 15
        %vm397 = vcmp.ge.s32.totalorder %v392, 1
        %vm398 = vcmp.lt.s32.totalorder %v392, 15
        %vm399 = vcmp.ge.s32.totalorder %v394, 2
        %vm400 = vcmp.lt.s32.totalorder %v394, 14
        %vm401 = vcmp.ge.s32.totalorder %v392, 2
        %vm402 = vcmp.lt.s32.totalorder %v392, 14
        %v403 = vpack.c.bf16 %v390, %v390
        %v404 = vpack.c.bf16 %v391, %v391
        %v407 = vunpack.c.l.b16 %v403
        %v408 = vunpack.c.l.b16 %v404
        %v409 = vpack.c.b16 %v408, %v407
        %411 = vst [vmem:[#allocation2] sm:$0x11] %v409
        %412 = vrot.lane.b32.xlu0 %v390, 1
        %v413 = vpop.permute.xlu0 %412
        %414 = vrot.lane.b32.xlu0 %v391, 1
        %v415 = vpop.permute.xlu0 %414
        %v416 = vlaneseq
        %v417 = vand.u32 %v416, 127
        %vm418 = vcmp.lt.s32.totalorder %v417, 1
        %v419 = vsel %vm418, %v413, %v415
        %v420 = vsel %vm418, %v415, %v413
        %v421 = vsel %vm395, 1, 0
        %v422 = vlaneseq
        %v423 = vshrl.u32 %v422, 7
        %v424 = vsub.s32 0, %v423
        %v425 = vrot.slane %v421, %v424
        %v426 = vlaneseq
        %v427 = vshrl.u32 %v426, 7
        %v428 = vsub.s32 1, %v427
        %v429 = vrot.slane %v421, %v428
        %vm430 = vcmp.eq.s32.totalorder %v425, 1
        %vm431 = vcmp.eq.s32.totalorder %v429, 1
        %v432 = vsel %vm430, %v420, -inf
        %v433 = vsel %vm431, %v419, -inf
        %v434 = vmax.f32 %v390, %v432
        %v435 = vmax.f32 %v391, %v433
        %436 = vrot.lane.b32.xlu0 %v390, 127
        %v437 = vpop.permute.xlu0 %436
        %438 = vrot.lane.b32.xlu0 %v391, 127
        %v439 = vpop.permute.xlu0 %438
        %vm440 = vcmp.lt.s32.totalorder %v417, 127
        %v441 = vsel %vm440, %v437, %v439
        %v442 = vsel %vm440, %v439, %v437
        %v443 = vsel %vm396, 1, 0
        %v444 = vlaneseq
        %v445 = vshrl.u32 %v444, 7
        %v446 = vsub.s32 0, %v445
        %v447 = vrot.slane %v443, %v446
        %v448 = vlaneseq
        %v449 = vshrl.u32 %v448, 7
        %v450 = vsub.s32 1, %v449
        %v451 = vrot.slane %v443, %v450
        %vm452 = vcmp.eq.s32.totalorder %v447, 1
        %vm453 = vcmp.eq.s32.totalorder %v451, 1
        %v454 = vsel %vm452, %v441, -inf
        %v455 = vsel %vm453, %v442, -inf
        %v456 = vmax.f32 %v434, %v454
        %v457 = vmax.f32 %v435, %v455
        %458 = vrot.lane.b32.xlu0 %v390, 2
        %v459 = vpop.permute.xlu0 %458
        %460 = vrot.lane.b32.xlu0 %v391, 2
        %v461 = vpop.permute.xlu0 %460
        %vm462 = vcmp.lt.s32.totalorder %v417, 2
        %v463 = vsel %vm462, %v459, %v461
        %v464 = vsel %vm462, %v461, %v459
        %v465 = vsel %vm399, 1, 0
        %v466 = vlaneseq
        %v467 = vshrl.u32 %v466, 7
        %v468 = vsub.s32 0, %v467
        %v469 = vrot.slane %v465, %v468
        %v470 = vlaneseq
        %v471 = vshrl.u32 %v470, 7
        %v472 = vsub.s32 1, %v471
        %v473 = vrot.slane %v465, %v472
        %vm474 = vcmp.eq.s32.totalorder %v469, 1
        %vm475 = vcmp.eq.s32.totalorder %v473, 1
        %v476 = vsel %vm474, %v464, -inf
        %v477 = vsel %vm475, %v463, -inf
        %v478 = vmax.f32 %v456, %v476
        %v479 = vmax.f32 %v457, %v477
        %480 = vrot.lane.b32.xlu0 %v390, 126
        %v481 = vpop.permute.xlu0 %480
        %482 = vrot.lane.b32.xlu0 %v391, 126
        %v483 = vpop.permute.xlu0 %482
        %vm484 = vcmp.lt.s32.totalorder %v417, 126
        %v485 = vsel %vm484, %v481, %v483
        %v486 = vsel %vm484, %v483, %v481
        %v487 = vsel %vm400, 1, 0
        %v488 = vlaneseq
        %v489 = vshrl.u32 %v488, 7
        %v490 = vsub.s32 0, %v489
        %v491 = vrot.slane %v487, %v490
        %v492 = vlaneseq
        %v493 = vshrl.u32 %v492, 7
        %v494 = vsub.s32 1, %v493
        %v495 = vrot.slane %v487, %v494
        %vm496 = vcmp.eq.s32.totalorder %v491, 1
        %vm497 = vcmp.eq.s32.totalorder %v495, 1
        %v498 = vsel %vm496, %v485, -inf
        %v499 = vsel %vm497, %v486, -inf
        %v500 = vmax.f32 %v478, %v498
        %v501 = vmax.f32 %v479, %v499
        %502 = vrot.lane.b32.xlu0 %v500, 16
        %v503 = vpop.permute.xlu0 %502
        %504 = vrot.lane.b32.xlu0 %v501, 16
        %v505 = vpop.permute.xlu0 %504
        %vm506 = vcmp.lt.s32.totalorder %v417, 16
        %v507 = vsel %vm506, %v503, %v505
        %v508 = vsel %vm506, %v505, %v503
        %v509 = vsel %vm397, 1, 0
        %v510 = vlaneseq
        %v511 = vshrl.u32 %v510, 7
        %v512 = vsub.s32 0, %v511
        %v513 = vrot.slane %v509, %v512
        %v514 = vlaneseq
        %v515 = vshrl.u32 %v514, 7
        %v516 = vsub.s32 1, %v515
        %v517 = vrot.slane %v509, %v516
        %vm518 = vcmp.eq.s32.totalorder %v513, 1
        %vm519 = vcmp.eq.s32.totalorder %v517, 1
        %v520 = vsel %vm518, %v508, -inf
        %v521 = vsel %vm519, %v507, -inf
        %v522 = vmax.f32 %v500, %v520
        %v523 = vmax.f32 %v501, %v521
        %524 = vrot.lane.b32.xlu0 %v500, 112
        %v525 = vpop.permute.xlu0 %524
        %526 = vrot.lane.b32.xlu0 %v501, 112
        %v527 = vpop.permute.xlu0 %526
        %vm528 = vcmp.lt.s32.totalorder %v417, 112
        %v529 = vsel %vm528, %v525, %v527
        %v530 = vsel %vm528, %v527, %v525
        %v531 = vsel %vm398, 1, 0
        %v532 = vlaneseq
        %v533 = vshrl.u32 %v532, 7
        %v534 = vsub.s32 0, %v533
        %v535 = vrot.slane %v531, %v534
        %v536 = vlaneseq
        %v537 = vshrl.u32 %v536, 7
        %v538 = vsub.s32 1, %v537
        %v539 = vrot.slane %v531, %v538
        %vm540 = vcmp.eq.s32.totalorder %v535, 1
        %vm541 = vcmp.eq.s32.totalorder %v539, 1
        %v542 = vsel %vm540, %v529, -inf
        %v543 = vsel %vm541, %v530, -inf
        %v544 = vmax.f32 %v522, %v542
        %v545 = vmax.f32 %v523, %v543
        %546 = vrot.lane.b32.xlu0 %v500, 32
        %v547 = vpop.permute.xlu0 %546
        %548 = vrot.lane.b32.xlu0 %v501, 32
        %v549 = vpop.permute.xlu0 %548
        %vm550 = vcmp.lt.s32.totalorder %v417, 32
        %v551 = vsel %vm550, %v547, %v549
        %v552 = vsel %vm550, %v549, %v547
        %v553 = vsel %vm401, 1, 0
        %v554 = vlaneseq
        %v555 = vshrl.u32 %v554, 7
        %v556 = vsub.s32 0, %v555
        %v557 = vrot.slane %v553, %v556
        %v558 = vlaneseq
        %v559 = vshrl.u32 %v558, 7
        %v560 = vsub.s32 1, %v559
        %v561 = vrot.slane %v553, %v560
        %vm562 = vcmp.eq.s32.totalorder %v557, 1
        %vm563 = vcmp.eq.s32.totalorder %v561, 1
        %v564 = vsel %vm562, %v552, -inf
        %v565 = vsel %vm563, %v551, -inf
        %v566 = vmax.f32 %v544, %v564
        %v567 = vmax.f32 %v545, %v565
        %568 = vrot.lane.b32.xlu0 %v500, 96
        %v569 = vpop.permute.xlu0 %568
        %570 = vrot.lane.b32.xlu0 %v501, 96
        %v571 = vpop.permute.xlu0 %570
        %vm572 = vcmp.lt.s32.totalorder %v417, 96
        %v573 = vsel %vm572, %v569, %v571
        %v574 = vsel %vm572, %v571, %v569
        %v575 = vsel %vm402, 1, 0
        %v576 = vlaneseq
        %v577 = vshrl.u32 %v576, 7
        %v578 = vsub.s32 0, %v577
        %v579 = vrot.slane %v575, %v578
        %v580 = vlaneseq
        %v581 = vshrl.u32 %v580, 7
        %v582 = vsub.s32 1, %v581
        %v583 = vrot.slane %v575, %v582
        %vm584 = vcmp.eq.s32.totalorder %v579, 1
        %vm585 = vcmp.eq.s32.totalorder %v583, 1
        %v586 = vsel %vm584, %v573, -inf
        %v587 = vsel %vm585, %v574, -inf
        %v588 = vmax.f32 %v566, %v586
        %v589 = vmax.f32 %v567, %v587
        %v590 = vpack.c.bf16 %v588, %v588
        %v591 = vpack.c.bf16 %v589, %v589
        %v594 = vunpack.c.l.b16 %v590
        %v595 = vunpack.c.l.b16 %v591
        %v596 = vpack.c.b16 %v595, %v594
        %v597 = vrot.slane %v596, 7
        %599 = vst [vmem:[#allocation2] sm:$0x22] %v597
        %600 = vrot.lane.b32.xlu0 %v588, 1
        %v601 = vpop.permute.xlu0 %600
        %602 = vrot.lane.b32.xlu0 %v589, 1
        %v603 = vpop.permute.xlu0 %602
        %v604 = vsel %vm418, %v601, %v603
        %v605 = vsel %vm418, %v603, %v601
        %v606 = vsel %vm430, %v605, -inf
        %v607 = vsel %vm431, %v604, -inf
        %v608 = vmax.f32 %v588, %v606
        %v609 = vmax.f32 %v589, %v607
        %610 = vrot.lane.b32.xlu0 %v588, 127
        %v611 = vpop.permute.xlu0 %610
        %612 = vrot.lane.b32.xlu0 %v589, 127
        %v613 = vpop.permute.xlu0 %612
        %v614 = vsel %vm440, %v611, %v613
        %v615 = vsel %vm440, %v613, %v611
        %v616 = vsel %vm452, %v614, -inf
        %v617 = vsel %vm453, %v615, -inf
        %v618 = vmax.f32 %v608, %v616
        %v619 = vmax.f32 %v609, %v617
        %620 = vrot.lane.b32.xlu0 %v588, 2
        %v621 = vpop.permute.xlu0 %620
        %622 = vrot.lane.b32.xlu0 %v589, 2
        %v623 = vpop.permute.xlu0 %622
        %v624 = vsel %vm462, %v621, %v623
        %v625 = vsel %vm462, %v623, %v621
        %v626 = vsel %vm474, %v625, -inf
        %v627 = vsel %vm475, %v624, -inf
        %v628 = vmax.f32 %v618, %v626
        %v629 = vmax.f32 %v619, %v627
        %630 = vrot.lane.b32.xlu0 %v588, 126
        %v631 = vpop.permute.xlu0 %630
        %632 = vrot.lane.b32.xlu0 %v589, 126
        %v633 = vpop.permute.xlu0 %632
        %v634 = vsel %vm484, %v631, %v633
        %v635 = vsel %vm484, %v633, %v631
        %v636 = vsel %vm496, %v634, -inf
        %v637 = vsel %vm497, %v635, -inf
        %v638 = vmax.f32 %v628, %v636
        %v639 = vmax.f32 %v629, %v637
        %640 = vrot.lane.b32.xlu0 %v638, 16
        %v641 = vpop.permute.xlu0 %640
        %642 = vrot.lane.b32.xlu0 %v639, 16
        %v643 = vpop.permute.xlu0 %642
        %v644 = vsel %vm506, %v641, %v643
        %v645 = vsel %vm506, %v643, %v641
        %v646 = vsel %vm518, %v645, -inf
        %v647 = vsel %vm519, %v644, -inf
        %v648 = vmax.f32 %v638, %v646
        %v649 = vmax.f32 %v639, %v647
        %650 = vrot.lane.b32.xlu0 %v638, 112
        %v651 = vpop.permute.xlu0 %650
        %652 = vrot.lane.b32.xlu0 %v639, 112
        %v653 = vpop.permute.xlu0 %652
        %v654 = vsel %vm528, %v651, %v653
        %v655 = vsel %vm528, %v653, %v651
        %v656 = vsel %vm540, %v654, -inf
        %v657 = vsel %vm541, %v655, -inf
        %v658 = vmax.f32 %v648, %v656
        %v659 = vmax.f32 %v649, %v657
        %660 = vrot.lane.b32.xlu0 %v638, 32
        %v661 = vpop.permute.xlu0 %660
        %662 = vrot.lane.b32.xlu0 %v639, 32
        %v663 = vpop.permute.xlu0 %662
        %v664 = vsel %vm550, %v661, %v663
        %v665 = vsel %vm550, %v663, %v661
        %v666 = vsel %vm562, %v665, -inf
        %v667 = vsel %vm563, %v664, -inf
        %v668 = vmax.f32 %v658, %v666
        %v669 = vmax.f32 %v659, %v667
        %670 = vrot.lane.b32.xlu0 %v638, 96
        %v671 = vpop.permute.xlu0 %670
        %672 = vrot.lane.b32.xlu0 %v639, 96
        %v673 = vpop.permute.xlu0 %672
        %v674 = vsel %vm572, %v671, %v673
        %v675 = vsel %vm572, %v673, %v671
        %v676 = vsel %vm584, %v674, -inf
        %v677 = vsel %vm585, %v675, -inf
        %v678 = vmax.f32 %v668, %v676
        %v679 = vmax.f32 %v669, %v677
        %v680 = vpack.c.bf16 %v678, %v678
        %v681 = vpack.c.bf16 %v679, %v679
        %v684 = vunpack.c.l.b16 %v680
        %v685 = vunpack.c.l.b16 %v681
        %v686 = vpack.c.b16 %v685, %v684
        %v687 = vrot.slane %v686, 6
        %689 = vst [vmem:[#allocation2] sm:$0x44] %v687
        %690 = vrot.lane.b32.xlu0 %v678, 1
        %v691 = vpop.permute.xlu0 %690
        %692 = vrot.lane.b32.xlu0 %v679, 1
        %v693 = vpop.permute.xlu0 %692
        %v694 = vsel %vm418, %v691, %v693
        %v695 = vsel %vm418, %v693, %v691
        %v696 = vsel %vm430, %v695, -inf
        %v697 = vsel %vm431, %v694, -inf
        %v698 = vmax.f32 %v678, %v696
        %v699 = vmax.f32 %v679, %v697
        %700 = vrot.lane.b32.xlu0 %v678, 127
        %v701 = vpop.permute.xlu0 %700
        %702 = vrot.lane.b32.xlu0 %v679, 127
        %v703 = vpop.permute.xlu0 %702
        %v704 = vsel %vm440, %v701, %v703
        %v705 = vsel %vm440, %v703, %v701
        %v706 = vsel %vm452, %v704, -inf
        %v707 = vsel %vm453, %v705, -inf
        %v708 = vmax.f32 %v698, %v706
        %v709 = vmax.f32 %v699, %v707
        %710 = vrot.lane.b32.xlu0 %v678, 2
        %v711 = vpop.permute.xlu0 %710
        %712 = vrot.lane.b32.xlu0 %v679, 2
        %v713 = vpop.permute.xlu0 %712
        %v714 = vsel %vm462, %v711, %v713
        %v715 = vsel %vm462, %v713, %v711
        %v716 = vsel %vm474, %v715, -inf
        %v717 = vsel %vm475, %v714, -inf
        %v718 = vmax.f32 %v708, %v716
        %v719 = vmax.f32 %v709, %v717
        %720 = vrot.lane.b32.xlu0 %v678, 126
        %v721 = vpop.permute.xlu0 %720
        %722 = vrot.lane.b32.xlu0 %v679, 126
        %v723 = vpop.permute.xlu0 %722
        %v724 = vsel %vm484, %v721, %v723
        %v725 = vsel %vm484, %v723, %v721
        %v726 = vsel %vm496, %v724, -inf
        %v727 = vsel %vm497, %v725, -inf
        %v728 = vmax.f32 %v718, %v726
        %v729 = vmax.f32 %v719, %v727
        %730 = vrot.lane.b32.xlu0 %v728, 16
        %v731 = vpop.permute.xlu0 %730
        %732 = vrot.lane.b32.xlu0 %v729, 16
        %v733 = vpop.permute.xlu0 %732
        %v734 = vsel %vm506, %v731, %v733
        %v735 = vsel %vm506, %v733, %v731
        %v736 = vsel %vm518, %v735, -inf
        %v737 = vsel %vm519, %v734, -inf
        %v738 = vmax.f32 %v728, %v736
        %v739 = vmax.f32 %v729, %v737
        %740 = vrot.lane.b32.xlu0 %v728, 112
        %v741 = vpop.permute.xlu0 %740
        %742 = vrot.lane.b32.xlu0 %v729, 112
        %v743 = vpop.permute.xlu0 %742
        %v744 = vsel %vm528, %v741, %v743
        %v745 = vsel %vm528, %v743, %v741
        %v746 = vsel %vm540, %v744, -inf
        %v747 = vsel %vm541, %v745, -inf
        %v748 = vmax.f32 %v738, %v746
        %v749 = vmax.f32 %v739, %v747
        %750 = vrot.lane.b32.xlu0 %v728, 32
        %v751 = vpop.permute.xlu0 %750
        %752 = vrot.lane.b32.xlu0 %v729, 32
        %v753 = vpop.permute.xlu0 %752
        %v754 = vsel %vm550, %v751, %v753
        %v755 = vsel %vm550, %v753, %v751
        %v756 = vsel %vm562, %v755, -inf
        %v757 = vsel %vm563, %v754, -inf
        %v758 = vmax.f32 %v748, %v756
        %v759 = vmax.f32 %v749, %v757
        %760 = vrot.lane.b32.xlu0 %v728, 96
        %v761 = vpop.permute.xlu0 %760
        %762 = vrot.lane.b32.xlu0 %v729, 96
        %v763 = vpop.permute.xlu0 %762
        %v764 = vsel %vm572, %v761, %v763
        %v765 = vsel %vm572, %v763, %v761
        %v766 = vsel %vm584, %v764, -inf
        %v767 = vsel %vm585, %v765, -inf
        %v768 = vmax.f32 %v758, %v766
        %v769 = vmax.f32 %v759, %v767
        %v770 = vpack.c.bf16 %v768, %v768
        %v771 = vpack.c.bf16 %v769, %v769
        %v774 = vunpack.c.l.b16 %v770
        %v775 = vunpack.c.l.b16 %v771
        %v776 = vpack.c.b16 %v775, %v774
        %v777 = vrot.slane %v776, 5
        %779 = vst [vmem:[#allocation2] sm:$0x88] %v777
        %v780 = vld [vmem:[%s5] sm:$0x3]
        %v781 = vld [vmem:[#allocation2] sm:$0xff]
        %v783 = vunpack.c.l.b16 %v781
        %v784 = vunpack.c.h.b16 %v781
        %v785 = vpack.c.b16 %v783, %v783
        %v786 = vpack.c.b16 %v784, %v784
        %vm787 = vcmask 64512
        %v789 = vsel %vm787, %v780, 0
        %vm791 = vcmask 1043456
        %v793 = vsel %vm791, %v785, 0
        %v796 = vsel %vm791, %v786, 0
        %798 = vmatprep.subr.bf16.mxu0 %v796
        %799 = vmatpush1.bf16.msra.mxu0 %v793
        %800 = vmatprep.subr.bf16.mxu0 0
        %801 = vmatpush1.bf16.msra.mxu0 0
        %802 = vmatprep.subr.bf16.mxu0 0
        %803 = vmatpush1.bf16.msra.mxu0 0
        %804 = vmatprep.subr.bf16.mxu0 0
        %805 = vmatpush1.bf16.msra.mxu0 0
        %806 = vmatprep.subr.bf16.mxu0 0
        %807 = vmatpush1.bf16.msra.mxu0 0
        %808 = vmatprep.subr.bf16.mxu0 0
        %809 = vmatpush1.bf16.msra.mxu0 0
        %810 = vmatprep.subr.bf16.mxu0 0
        %811 = vmatpush1.bf16.msra.mxu0 0
        %812 = vmatprep.subr.bf16.mxu0 0
        %813 = vmatpush1.bf16.msra.mxu0 0
        %814 = vmatprep.subr.bf16.mxu0 0
        %815 = vmatpush1.bf16.msra.mxu0 0
        %816 = vmatprep.subr.bf16.mxu0 0
        %817 = vmatpush1.bf16.msra.mxu0 0
        %818 = vmatprep.subr.bf16.mxu0 0
        %819 = vmatpush1.bf16.msra.mxu0 0
        %820 = vmatprep.subr.bf16.mxu0 0
        %821 = vmatpush1.bf16.msra.mxu0 0
        %822 = vmatprep.subr.bf16.mxu0 0
        %823 = vmatpush1.bf16.msra.mxu0 0
        %824 = vmatprep.subr.bf16.mxu0 0
        %825 = vmatpush1.bf16.msra.mxu0 0
        %826 = vmatprep.subr.bf16.mxu0 0
        %827 = vmatpush1.bf16.msra.mxu0 0
        %828 = vmatprep.subr.bf16.mxu0 0
        %829 = vmatpush1.bf16.msra.mxu0 0
        %830 = vmatprep.mubr.bf16.mxu0 0
        %831 = vmatmul.mubr.bf16.gmra.mrb[0].mxu0 %v789
        %v832 = vpop.f32.mrb[0].mxu0
        %v833 = vadd.f32 0.0, %v832
        %v834 = vpop.f32.mrb[0].mxu0
        %v835 = vadd.f32 0.0, %v834
        %v836 = vpop.f32.mrb[0].mxu0
        %v837 = vpop.f32.mrb[0].mxu0
        %838 = vdwg.mxu0
        %v839 = vld [vmem:[%s6] sm:$0xf]
        %841 = vset.pattern.permute.xlu0 0
        %842 = vperm.xlu0 %841, %v839
        %v843 = vpop.permute.xlu0 %842
        %v845 = vmul.f32 %v833, %v843
        %v846 = vmul.f32 %v835, %v843
        %v847 = vld [vmem:[%s7] sm:$0xf]
        %849 = vset.pattern.permute.xlu0 0
        %850 = vperm.xlu0 %849, %v847
        %v851 = vpop.permute.xlu0 %850
        %v853 = vadd.f32 %v845, %v851
        %v854 = vadd.f32 %v846, %v851
        %v855 = vsub.f32 0.0, %v853
        %v856 = vsub.f32 0.0, %v854
        %v857 = vmul.f32 %v855, 1.442695
        %v858 = vpow.pop %v857
        %v859 = vmul.f32 %v856, 1.442695
        %v860 = vpow.pop %v859
        %v861 = vadd.f32 %v858, 1.0
        %v862 = vadd.f32 %v860, 1.0
        %v863 = vrcp.pop %v861
        %v864 = vrcp.pop %v862
        %v865 = vmul.f32 %v853, %v863
        %v866 = vmul.f32 %v854, %v864
        %v869 = vcombine.low %v865, %v866
        %871 = vst [vmem:[%s298] sm:$0xff] %v869
        %s872 = sand.u32 %s203, 1
        %s873 = scalar_lea.sflag [#allocation4], %s872
        %s874 = sand.u32 %s203, 1
        %s875 = smul.addr %s874, 8
        %s876 = scalar_lea.vmem [#allocation3], %s875
        // Predicated region
        $region53: #{tpu_custom_call.1} parent=51 // pred_check
          %p877 = pneg %p213
        $region54: #{tpu_custom_call.1} parent=51 // pred_check_branch
          %879 = sbr.rel (%p877) target = $region56
        $region55: #{tpu_custom_call.1} parent=51 // pred_region
          %s881 = ssub.s32 128, 128
          %882 = vsyncadd %s873, %s881
          %s883 = smul.addr %s22, 2
          %s884 = smul.addr %s883, 64
          %s885 = scalar_lea.hbm %s8, %s884
          %s887 = sshll.u32 %s876, 4
          %s888 = int_to_ptr.vmem [resolvable:$true] %s887
          %890 = dma.vmem_to_hbm [thread:$0]  %s888, 128, %s885, %s873
        $region56: #{tpu_custom_call.1} parent=51 // pred_fallthru
          _
      $region52: #{tpu_custom_call.1} parent=5 // pred_fallthru
        _
      %p891 = scmp.le.s32.totalorder 2, %s17
      // Predicated region
      $region57: #{tpu_custom_call.1} parent=5 // pred_check
        %p892 = pneg %p891
      $region58: #{tpu_custom_call.1} parent=5 // pred_check_branch
        %894 = sbr.rel (%p892) target = $region60
      $region59: #{tpu_custom_call.1} parent=5 // pred_region
        %s895 = ssub.s32 %s17, 2
        // Predicated region
        $region61: #{tpu_custom_call.1} parent=59 // pred_check
          %p896 = pneg %p219
        $region62: #{tpu_custom_call.1} parent=59 // pred_check_branch
          %898 = sbr.rel (%p896) target = $region64
        $region63: #{tpu_custom_call.1} parent=59 // pred_region
          %s899 = sand.u32 %s204, 1
          %s900 = scalar_lea.sflag [#allocation4], %s899
          %s901 = sand.u32 %s204, 1
          %s902 = smul.addr %s901, 8
          %s903 = scalar_lea.vmem [#allocation3], %s902
          %904 = dma.done %s900, 128
        $region64: #{tpu_custom_call.1} parent=59 // pred_fallthru
          _
      $region60: #{tpu_custom_call.1} parent=5 // pred_fallthru
        _
    $region6: #{tpu_custom_call.1} parent=1 // loop_footer
      %s21 = sadd.s32 1, %s17
    $region7: #{tpu_custom_call.1} parent=1 // loop_footer_branch
      %16 = sbr.rel target = $region3
    $region8: #{tpu_custom_call.1} parent=1 // loop_exit
      _
    %905 = vsyncpa [#allocation4], 1
    %s906 = scalar_lea.sflag [#allocation4], 1
    %907 = vsyncpa %s906, 1

</llo_original>
